<compile_context>
chip_gen: v5e
topology: v5e:2x2
jax: 0.10.0
libtpu: 0.0.40
codegen_flags: <defaults>
</compile_context>

<pallas_src>
import jax
import jax.numpy as jnp
from jax.experimental import pallas as pl
from jax.experimental.pallas import tpu as pltpu


def _round_up(x, m):
    return (x + m - 1) // m * m


# Keep total live VMEM buffers well under the tightest scoped budget across
# generations (v7x: 32 MiB scoped default / 64 MiB physical).
_TILE_BUDGET_BYTES = 24 * 2**20
_VMEM_LIMIT_BYTES = 32 * 2**20


# ---------------------------------------------------------------------------
# Kernels
# ---------------------------------------------------------------------------
def _reward_kernel_resident(x_ref, w_ref, o_ref):
    """Single K sweep per output tile; W slab resident across the M axis.

    x_ref: (tm, k_pad)   streamed rows of x (contraction dim last, lane-dense)
    w_ref: (k_pad, tn)   pre-transposed weight slab (constant index across M)
    o_ref: (tm, tn)
    """
    o_ref[...] = jnp.dot(
        x_ref[...], w_ref[...], preferred_element_type=jnp.float32
    ).astype(o_ref.dtype)


def _reward_kernel_ksplit(x_ref, w_ref, o_ref, acc_ref):
    """Fallback when the weight cannot stay resident in VMEM: K grid axis."""
    @pl.when(pl.program_id(2) == 0)
    def _():
        acc_ref[...] = jnp.zeros_like(acc_ref)

    acc_ref[...] += jnp.dot(
        x_ref[...], w_ref[...], preferred_element_type=jnp.float32
    )

    @pl.when(pl.program_id(2) == pl.num_programs(2) - 1)
    def _():
        o_ref[...] = acc_ref[...].astype(o_ref.dtype)


# ---------------------------------------------------------------------------
# One-time weight preparation (parameter init time, NOT the forward hot path)
# ---------------------------------------------------------------------------
def prepare_reward_weight(weight, *, compute_dtype=None):
    """Pad + transpose the nn.Linear weight once.

    weight: [output_dim, input_dim] (PyTorch layout).
    Returns W^T zero-padded to (k_pad, n_pad).  Zero padding on K is exact for
    the dot; padded N columns are sliced off after the kernel.
    """
    output_dim, input_dim = weight.shape
    if compute_dtype is not None:
        weight = weight.astype(compute_dtype)
    k_pad = _round_up(input_dim, 128)
    n_pad = _round_up(output_dim, 128)
    w_t = jnp.zeros((k_pad, n_pad), weight.dtype)
    w_t = w_t.at[:input_dim, :output_dim].set(weight.T)
    return w_t


def _pick_tm(m_pad, tm_cap):
    """Pick the M tile.  m_pad and tm_cap are multiples of 8, tm_cap >= 8."""
    if m_pad <= 8:
        return m_pad, m_pad
    target = min(tm_cap, 512)                  # big streaming tiles
    n_blocks = max(2, -(-m_pad // target))     # >=2 so both v7x TCs get work
    tm = _round_up(-(-m_pad // n_blocks), 8)
    tm = min(tm, tm_cap)
    return tm, _round_up(m_pad, tm)


# ---------------------------------------------------------------------------
# Forward
# ---------------------------------------------------------------------------
def reward_func_forward(x, w_t, output_dim, *, compute_dtype=None):
    """RewardFunc.forward: y = x @ weight.T (no bias).

    x:   [batch, input_dim]
    w_t: prepared weight from prepare_reward_weight(), shape (k_pad, n_pad)
    Returns [batch, output_dim] in x.dtype.
    """
    batch, input_dim = x.shape
    k_pad, n_pad = w_t.shape
    assert k_pad == _round_up(input_dim, 128), "w_t must come from prepare_reward_weight"
    assert n_pad >= output_dim
    out_dtype = x.dtype
    if compute_dtype is not None:
        x = x.astype(compute_dtype)

    ix = jnp.dtype(x.dtype).itemsize
    iw = jnp.dtype(w_t.dtype).itemsize
    io = jnp.dtype(out_dtype).itemsize

    # N tile: a reward head has output_dim padded to a single 128-lane block;
    # larger heads use 256/128-wide N blocks.
    if n_pad <= 512:
        tn = n_pad
    elif n_pad % 256 == 0:
        tn = 256
    else:
        tn = 128

    # --- resident-W, single-K-sweep path (preferred) ----------------------
    w_buf_bytes = 2 * k_pad * tn * iw                  # conservatively x2
    per_row_bytes = 2 * k_pad * ix + 2 * tn * io       # x + out double buffers
    avail = _TILE_BUDGET_BYTES - w_buf_bytes
    max_tm = (avail // per_row_bytes) // 8 * 8 if avail > 0 else 0
    use_resident = max_tm >= 8

    m_pad = _round_up(batch, 8)
    if use_resident:
        tm, m_pad = _pick_tm(m_pad, max_tm)
    else:
        tm, m_pad = _pick_tm(m_pad, 512)

    # Pad x only when actually needed (ragged batch or non-lane-aligned K);
    # at realistic aligned shapes this is a no-op and x streams straight in.
    if (m_pad, k_pad) != (batch, input_dim):
        xp = jnp.zeros((m_pad, k_pad), x.dtype).at[:batch, :input_dim].set(x)
    else:
        xp = x

    cost = pl.CostEstimate(
        flops=2 * m_pad * n_pad * k_pad,
        transcendentals=0,
        bytes_accessed=xp.size * ix + w_t.size * iw + m_pad * n_pad * io,
    )

    if use_resident:
        grid = (m_pad // tm, n_pad // tn)
        out = pl.pallas_call(
            _reward_kernel_resident,
            out_shape=jax.ShapeDtypeStruct((m_pad, n_pad), out_dtype),
            grid_spec=pltpu.PrefetchScalarGridSpec(
                num_scalar_prefetch=0,
                grid=grid,
                in_specs=[
                    # x streams along M; whole K in one block (no K grid axis).
                    pl.BlockSpec((tm, k_pad), lambda i, j: (i, 0)),
                    # W slab constant across M -> DMA'd once, resident in VMEM.
                    pl.BlockSpec((k_pad, tn), lambda i, j: (0, j)),
                ],
                out_specs=pl.BlockSpec((tm, tn), lambda i, j: (i, j)),
            ),
            compiler_params=pltpu.CompilerParams(
                dimension_semantics=("parallel", "parallel"),
                vmem_limit_bytes=_VMEM_LIMIT_BYTES,
            ),
            cost_estimate=cost,
        )(xp, w_t)
    else:
        # Weight too large for VMEM residency: classic tiled M/N/K matmul
        # with an f32 accumulator across the K axis.
        tk = next(c for c in (2048, 1024, 512, 256, 128) if k_pad % c == 0)
        grid = (m_pad // tm, n_pad // tn, k_pad // tk)
        out = pl.pallas_call(
            _reward_kernel_ksplit,
            out_shape=jax.ShapeDtypeStruct((m_pad, n_pad), out_dtype),
            grid_spec=pltpu.PrefetchScalarGridSpec(
                num_scalar_prefetch=0,
                grid=grid,
                in_specs=[
                    pl.BlockSpec((tm, tk), lambda i, j, k: (i, k)),
                    pl.BlockSpec((tk, tn), lambda i, j, k: (k, j)),
                ],
                out_specs=pl.BlockSpec((tm, tn), lambda i, j, k: (i, j)),
                scratch_shapes=[pltpu.VMEM((tm, tn), jnp.float32)],
            ),
            compiler_params=pltpu.CompilerParams(
                dimension_semantics=("parallel", "parallel", "arbitrary"),
                vmem_limit_bytes=_VMEM_LIMIT_BYTES,
            ),
            cost_estimate=cost,
        )(xp, w_t)

    # Slice padding back off.
    return out[:batch, :output_dim]


if __name__ == "__main__":
    # Small shapes consistent with the module: input_dim=32, output_dim=8, batch=2.
    batch, input_dim, output_dim = 2, 32, 8

    key = jax.random.PRNGKey(0)
    kx, kw, kx2, kw2 = jax.random.split(key, 4)

    x = jax.random.normal(kx, (batch, input_dim), dtype=jnp.float32)
    # init_weights_with_norm_one: weights ~ Normal(0, 0.01), no bias.
    weight = 0.01 * jax.random.normal(kw, (output_dim, input_dim), dtype=jnp.float32)

    w_t = prepare_reward_weight(weight)            # once, at "parameter init"
    y = jax.block_until_ready(reward_func_forward(x, w_t, output_dim))

    y_ref = jnp.dot(x, weight.T, precision="highest")
    assert y.shape == (batch, output_dim)
    assert jnp.allclose(y, y_ref, atol=1e-4, rtol=1e-4)

    # Second small check: multi-block M grid (grid_m == 2) and the no-pad fast
    # path (batch % 8 == 0, input_dim % 128 == 0).
    b2, d_in2, d_out2 = 48, 256, 8
    x2 = jax.random.normal(kx2, (b2, d_in2), dtype=jnp.float32)
    w2 = 0.01 * jax.random.normal(kw2, (d_out2, d_in2), dtype=jnp.float32)
    w2_t = prepare_reward_weight(w2)
    y2 = jax.block_until_ready(reward_func_forward(x2, w2_t, d_out2))
    y2_ref = jnp.dot(x2, w2.T, precision="highest")
    assert y2.shape == (b2, d_out2)
    assert jnp.allclose(y2, y2_ref, atol=1e-3, rtol=1e-3)

    print("KERNEL_OK")
</pallas_src>

<mosaic_0001>
module attributes {stable_mosaic.version = 11 : i64} {
  func.func @_reward_kernel_resident(%arg0: i32, %arg1: i32, %arg2: memref<8x128xf32, #tpu.memory_space<vmem>>, %arg3: memref<128x128xf32, #tpu.memory_space<vmem>>, %arg4: memref<8x128xf32, #tpu.memory_space<vmem>>) attributes {dimension_semantics = [#tpu.dimension_semantics<parallel>, #tpu.dimension_semantics<parallel>], iteration_bounds = array<i64: 1, 1>, scalar_prefetch = 0 : i64, scratch_operands = 0 : i64, tpu.core_type = #tpu.core_type<tc>, window_params = [{transform_indices = @transform_0, window_bounds = array<i64: 8, 128>}, {transform_indices = @transform_1, window_bounds = array<i64: 128, 128>}, {transform_indices = @transform_2, window_bounds = array<i64: 8, 128>}]} {
    %c0 = arith.constant 0 : index
    %c0_0 = arith.constant 0 : index
    %0 = vector.load %arg2[%c0, %c0_0] : memref<8x128xf32, #tpu.memory_space<vmem>>, vector<8x128xf32>
    %c0_1 = arith.constant 0 : index
    %c0_2 = arith.constant 0 : index
    %1 = vector.load %arg3[%c0_1, %c0_2] : memref<128x128xf32, #tpu.memory_space<vmem>>, vector<128x128xf32>
    %cst = arith.constant dense<0.000000e+00> : vector<8x128xf32>
    %2 = tpu.matmul %0, %1, %cst {dimension_numbers = #tpu.dot_dimension_numbers<[1], [0], [0], [1], [0, 0, 1, 1], [], []>} : vector<8x128xf32>, vector<128x128xf32>, vector<8x128xf32> -> vector<8x128xf32>
    %c0_3 = arith.constant 0 : index
    %c0_4 = arith.constant 0 : index
    %3 = vector.load %arg4[%c0_3, %c0_4] : memref<8x128xf32, #tpu.memory_space<vmem>>, vector<8x128xf32>
    tpu.vector_store %arg4[%c0_3, %c0_4], %2 {strides = array<i32>} : memref<8x128xf32, #tpu.memory_space<vmem>>, vector<8x128xf32>,
    return
  }
  func.func @transform_0(%arg0: i32, %arg1: i32) -> (i32, i32) {
    %c0_i32 = arith.constant 0 : i32
    %c0_i32_0 = arith.constant 0 : i32
    return %arg0, %c0_i32 : i32, i32
  }
  func.func @transform_1(%arg0: i32, %arg1: i32) -> (i32, i32) {
    %c0_i32 = arith.constant 0 : i32
    %c0_i32_0 = arith.constant 0 : i32
    return %c0_i32, %arg1 : i32, i32
  }
  func.func @transform_2(%arg0: i32, %arg1: i32) -> (i32, i32) {
    %c0_i32 = arith.constant 0 : i32
    return %arg0, %arg1 : i32, i32
  }
}

</mosaic_0001>

<llo_original>
// kernel: tpu_custom_call.1
$region0: #{tpu_custom_call.1}
  #allocation0 [shape = 'u32[]', space=smem, size = 0x4, offset = 0x4, fixed_abs, tag = 'smem constant byte address 0x4 - core index']
  #allocation1 [shape = 'u32[72,128]{1,0:T(1,128)}', space=vmem, size = 0x9000, scoped, tag = 'internal scratch']
  %s0 = inlined_call_operand.hbm [shape: f32[8,128], index: 0, kind: input, shape index: {}]
  %s1 = inlined_call_operand.hbm [shape: f32[128,128], index: 1, kind: input, shape index: {}]
  %s2 = inlined_call_operand.hbm [shape: f32[8,128], index: 2, kind: output, shape index: {}]
  %s3 = sld [smem:[#allocation0]]
  $region26: #{tpu_custom_call.1} parent=0
    _
  %s5 = ssub.s32 1, %s3
  %s6 = scalar_select 0, %s5, %s3
  $region1: #{tpu_custom_call.1} parent=0
    #allocation2 [shape = 'u8[4096]{0}', space=vmem, size = 0x1000, scoped, tag = 'input window, operand 0, single buffered']
    #allocation3 [shape = 's32[1]{0}', space=sflag, size = 0x4, scoped, tag = 'scoped memory for tpu_custom_call.1']
    #allocation4 [shape = 's32[1]{0}', space=sflag, size = 0x4, scoped, tag = 'scoped memory for tpu_custom_call.1']
    #allocation5 [shape = 'u8[65536]{0}', space=vmem, size = 0x10000, scoped, tag = 'input window, operand 1, single buffered']
    #allocation6 [shape = 's32[1]{0}', space=sflag, size = 0x4, scoped, tag = 'scoped memory for tpu_custom_call.1']
    #allocation7 [shape = 'u8[4096]{0}', space=vmem, size = 0x1000, scoped, tag = 'output window, operand 0, single buffered']
    %7 = vsyncpa [#allocation3], 0
    %8 = vsyncpa [#allocation6], 0
    %9 = vsyncpa [#allocation4], 0
    // Predicated region
    $region2: #{tpu_custom_call.1} parent=1 // pred_check
      _
    $region3: #{tpu_custom_call.1} parent=1 // pred_check_branch
      %11 = sbr.rel (0) target = $region5
    $region4: #{tpu_custom_call.1} parent=1 // pred_region
      %13 = vsyncadd [#allocation3], 0
      %s15 = sshll.u32 %s0, 4
      %s16 = int_to_ptr.hbm [resolvable:$true] %s15
      %s17 = sshll.u32 [#allocation2], 4
      %s18 = int_to_ptr.vmem [resolvable:$true] %s17
      %20 = dma.hbm_to_vmem [thread:$0]  %s16, 128, %s18, [#allocation3]
    $region5: #{tpu_custom_call.1} parent=1 // pred_fallthru
      _
    // Predicated region
    $region6: #{tpu_custom_call.1} parent=1 // pred_check
      _
    $region7: #{tpu_custom_call.1} parent=1 // pred_check_branch
      %22 = sbr.rel (0) target = $region9
    $region8: #{tpu_custom_call.1} parent=1 // pred_region
      %24 = vsyncadd [#allocation6], 0
      %s25 = sshll.u32 %s1, 4
      %s26 = int_to_ptr.hbm [resolvable:$true] %s25
      %s27 = sshll.u32 [#allocation5], 4
      %s28 = int_to_ptr.vmem [resolvable:$true] %s27
      %33 = dma.hbm_to_vmem [thread:$0]  %s26, 2048, %s28, [#allocation6], 128, 128, 8
    $region9: #{tpu_custom_call.1} parent=1 // pred_fallthru
      _
    // Predicated region
    $region10: #{tpu_custom_call.1} parent=1 // pred_check
      _
    $region11: #{tpu_custom_call.1} parent=1 // pred_check_branch
      %35 = sbr.rel (0) target = $region13
    $region12: #{tpu_custom_call.1} parent=1 // pred_region
      %37 = dma.done [#allocation3], 128
    $region13: #{tpu_custom_call.1} parent=1 // pred_fallthru
      _
    // Predicated region
    $region14: #{tpu_custom_call.1} parent=1 // pred_check
      _
    $region15: #{tpu_custom_call.1} parent=1 // pred_check_branch
      %39 = sbr.rel (0) target = $region17
    $region16: #{tpu_custom_call.1} parent=1 // pred_region
      %41 = dma.done [#allocation6], 2048
    $region17: #{tpu_custom_call.1} parent=1 // pred_fallthru
      _
    %v42 = vld [vmem:[#allocation2] sm:$0xff]
    %v43 = vld [vmem:[#allocation5] sm:$0xff]
    %v44 = vld [vmem:[#allocation5 + $0x8] sm:$0xff]
    %v45 = vld [vmem:[#allocation5 + $0x10] sm:$0xff]
    %v46 = vld [vmem:[#allocation5 + $0x18] sm:$0xff]
    %v47 = vld [vmem:[#allocation5 + $0x20] sm:$0xff]
    %v48 = vld [vmem:[#allocation5 + $0x28] sm:$0xff]
    %v49 = vld [vmem:[#allocation5 + $0x30] sm:$0xff]
    %v50 = vld [vmem:[#allocation5 + $0x38] sm:$0xff]
    %v51 = vld [vmem:[#allocation5 + $0x40] sm:$0xff]
    %v52 = vld [vmem:[#allocation5 + $0x48] sm:$0xff]
    %v53 = vld [vmem:[#allocation5 + $0x50] sm:$0xff]
    %v54 = vld [vmem:[#allocation5 + $0x58] sm:$0xff]
    %v55 = vld [vmem:[#allocation5 + $0x60] sm:$0xff]
    %v56 = vld [vmem:[#allocation5 + $0x68] sm:$0xff]
    %v57 = vld [vmem:[#allocation5 + $0x70] sm:$0xff]
    %v58 = vld [vmem:[#allocation5 + $0x78] sm:$0xff]
    %59 = vmatpush.msra.mxu0 %v58
    %60 = vmatpush.msra.mxu0 %v57
    %61 = vmatpush.msra.mxu0 %v56
    %62 = vmatpush.msra.mxu0 %v55
    %63 = vmatpush.msra.mxu0 %v54
    %64 = vmatpush.msra.mxu0 %v53
    %65 = vmatpush.msra.mxu0 %v52
    %66 = vmatpush.msra.mxu0 %v51
    %67 = vmatpush.msra.mxu0 %v50
    %68 = vmatpush.msra.mxu0 %v49
    %69 = vmatpush.msra.mxu0 %v48
    %70 = vmatpush.msra.mxu0 %v47
    %71 = vmatpush.msra.mxu0 %v46
    %72 = vmatpush.msra.mxu0 %v45
    %73 = vmatpush.msra.mxu0 %v44
    %74 = vmatpush.msra.mxu0 %v43
    %75 = vmatmul.f32.gmra.mxu0 %v42
    %v76 = vpop.f32.mrf.mxu0
    %v77 = vadd.f32 0.0, %v76
    %78 = vdwg.mxu0
    %79 = vst [vmem:[#allocation7] sm:$0xff] %v77
    // Predicated region
    $region18: #{tpu_custom_call.1} parent=1 // pred_check
      _
    $region19: #{tpu_custom_call.1} parent=1 // pred_check_branch
      %81 = sbr.rel (0) target = $region21
    $region20: #{tpu_custom_call.1} parent=1 // pred_region
      %83 = vsyncadd [#allocation4], 0
      %s85 = sshll.u32 [#allocation7], 4
      %s86 = int_to_ptr.vmem [resolvable:$true] %s85
      %s87 = sshll.u32 %s2, 4
      %s88 = int_to_ptr.hbm [resolvable:$true] %s87
      %90 = dma.vmem_to_hbm [thread:$0]  %s86, 128, %s88, [#allocation4]
    $region21: #{tpu_custom_call.1} parent=1 // pred_fallthru
      _
    // Predicated region
    $region22: #{tpu_custom_call.1} parent=1 // pred_check
      _
    $region23: #{tpu_custom_call.1} parent=1 // pred_check_branch
      %92 = sbr.rel (0) target = $region25
    $region24: #{tpu_custom_call.1} parent=1 // pred_region
      %94 = dma.done [#allocation4], 128
    $region25: #{tpu_custom_call.1} parent=1 // pred_fallthru
      _
    %95 = vsyncpa [#allocation3], 1
    %96 = vsyncpa [#allocation6], 1
    %97 = vsyncpa [#allocation4], 1

</llo_original>
